<compile_context>
chip_gen: v6e
topology: v6e:2x2x1
jax: 0.10.0
libtpu: 0.0.40
codegen_flags: <defaults>
</compile_context>

<pallas_src>
import functools
import math

import jax
import jax.numpy as jnp
from jax import lax
from jax.experimental import pallas as pl
from jax.experimental.pallas import tpu as pltpu

EPS = 1e-8


def _round_up(x, m):
    return ((x + m - 1) // m) * m


# ---------------------------------------------------------------------------
# ordinal == 2 fast path: conv + Gaussian gate as two MXU matmuls.
# ---------------------------------------------------------------------------
def _fgn_kernel_ord2(x_ref, a_ref, icf2_ref, res_ref, g_ref):
    # x_ref:    (tm, Dp)     im2col patches with a trailing ones column, zero-padded
    # a_ref:    (Dp, 2*Cp)   [ W ; bias  |  -2*c*icf2 ; sum_d c^2*icf2 ]
    # icf2_ref: (Dp, Cp)     clamp(inv_covars, 1/eps)^2 broadcast over in_channels
    x = x_ref[...]
    cp = icf2_ref.shape[1]

    y = jnp.dot(x, a_ref[...], preferred_element_type=jnp.float32)     # (tm, 2*Cp)
    conv = y[:, :cp]                                                    # bias folded in
    q = jnp.dot(x * x, icf2_ref[...], preferred_element_type=jnp.float32)
    dist2 = jnp.maximum(q + y[:, cp:], 0.0)                             # guard cancellation
    g = jnp.exp(-dist2)

    g_ref[...] = g
    res_ref[...] = conv * g


# ---------------------------------------------------------------------------
# general-ordinal path: elementwise gate, chunked over D inside the kernel.
# ---------------------------------------------------------------------------
def _fgn_kernel_general(x_ref, w_ref, cen_ref, icf_ref, res_ref, g_ref, *,
                        ordinal, d_chunk):
    x = x_ref[...]
    conv = jnp.dot(x, w_ref[...], preferred_element_type=jnp.float32)   # bias folded in

    tm = x_ref.shape[0]
    cp = w_ref.shape[1]
    n_chunks = x_ref.shape[1] // d_chunk
    o_int = int(ordinal) if float(ordinal).is_integer() and ordinal >= 1.0 else None

    def body(i, acc):
        lo = pl.multiple_of(i * d_chunk, d_chunk)
        xc = x_ref[:, pl.ds(lo, d_chunk)]            # (tm, dc)
        cc = cen_ref[pl.ds(lo, d_chunk), :]          # (dc, Cp)
        ic = icf_ref[pl.ds(lo, d_chunk), :]          # (dc, Cp)
        s = jnp.abs(xc[:, :, None] - cc[None, :, :]) * ic[None, :, :]
        if ordinal < 1.0:
            s = s + 1e-32
        if o_int is not None:                        # integer ordinal: repeated multiply
            p = s
            for _ in range(o_int - 1):
                p = p * s
        else:
            p = jnp.power(s, ordinal)
        return acc + jnp.sum(p, axis=1)

    dist = lax.fori_loop(0, n_chunks, body, jnp.zeros((tm, cp), jnp.float32))
    g = jnp.exp(-dist)
    g_ref[...] = g
    res_ref[...] = conv * g


def fgn_conv1d_forward(x, weight, bias, centers, inv_covars, *,
                       stride=1, dilation=1, padding=0, ordinal=2.0, tm=1024):
    """Forward pass of FGN_Conv1d (covar_type='diag', padding_mode='zeros',
    prev_g=None). Returns (res, g), both (B, C_out, L_out)."""
    # TODO(synk): prev_g path (strided max over previous gates) not implemented;
    # the default forward call (prev_g=None) is reproduced exactly.
    x = x.astype(jnp.float32)
    B, C_in, L = x.shape
    C_out, _, K = weight.shape
    L_out = (L + 2 * padding - dilation * (K - 1) - 1) // stride + 1
    D = C_in * K
    M = B * L_out

    # Padded sizes: lane-dense outputs and full MXU tiles.
    Dp = _round_up(D + 1, 128)      # +1 = constant-ones column (bias/const fold)
    Cp = _round_up(C_out, 128)

    # ---- glue: im2col (== torch.as_strided view of the padded input) ----
    xp = jnp.pad(x, ((0, 0), (0, 0), (padding, padding)))
    idx = (jnp.arange(L_out) * stride)[:, None] + (jnp.arange(K) * dilation)[None, :]
    patches = xp[:, :, idx]                                   # (B, C_in, L_out, K)
    patches = patches.transpose(0, 2, 1, 3).reshape(M, D)     # (B*L_out, C_in*K)

    # ---- row tile selection against a VMEM budget ----
    if ordinal != 2.0:
        tm = min(tm, 64)            # bound the (tm, d_chunk, Cp) gate intermediate
    tm_eff = min(tm, _round_up(M, 8))
    tm_eff = max(8, _round_up(tm_eff, 8))

    def _footprint(t):
        io = 2 * (t * Dp + 2 * t * Cp) * 4            # double-buffered x + 2 outputs
        params = 2 * (Dp * 2 * Cp + Dp * Cp) * 4      # grid-invariant operands
        return io + params

    budget = 40 * 1024 * 1024
    while tm_eff > 8 and _footprint(tm_eff) > budget:
        tm_eff = max(8, _round_up(tm_eff // 2, 8))
    vmem_limit = int(min(max(_footprint(tm_eff) + (8 << 20), 32 << 20), 48 << 20))

    Mp = _round_up(M, tm_eff)

    # x_aug: patches + ones column, zero-padded to (Mp, Dp)
    x_aug = jnp.concatenate([patches, jnp.ones((M, 1), jnp.float32)], axis=1)
    x_aug = jnp.pad(x_aug, ((0, Mp - M), (0, Dp - (D + 1))))

    # ---- grid-invariant parameter prep (hoisted out of the kernel) ----
    w_flat = weight.transpose(1, 2, 0).reshape(D, C_out)      # [ci*K+k, co] = W[co,ci,k]
    cen_flat = centers.transpose(0, 2, 1).reshape(D, C_out)   # [ci*K+k, co] = centers[ci,co,k]
    icf_cl = jnp.minimum(inv_covars, 1.0 / EPS)               # clamp(max=1/eps), (C_out, K)
    icf2_flat = jnp.tile((icf_cl * icf_cl).T, (C_in, 1))      # (D, C_out)

    grid = (Mp // tm_eff,)
    out_shapes = (jax.ShapeDtypeStruct((Mp, Cp), jnp.float32),
                  jax.ShapeDtypeStruct((Mp, Cp), jnp.float32))
    out_specs = [pl.BlockSpec((tm_eff, Cp), lambda i: (i, 0)),
                 pl.BlockSpec((tm_eff, Cp), lambda i: (i, 0))]
    cparams = pltpu.CompilerParams(dimension_semantics=("parallel",),
                                   vmem_limit_bytes=vmem_limit)

    if ordinal == 2.0:
        # A = [ W ; bias | -2*c*icf2 ; sum_d c^2*icf2 ]   shape (Dp, 2*Cp)
        a_mat = jnp.zeros((Dp, 2 * Cp), jnp.float32)
        a_mat = a_mat.at[:D, :C_out].set(w_flat)
        a_mat = a_mat.at[D, :C_out].set(bias.astype(jnp.float32))
        a_mat = a_mat.at[:D, Cp:Cp + C_out].set(-2.0 * cen_flat * icf2_flat)
        a_mat = a_mat.at[D, Cp:Cp + C_out].set(
            jnp.sum(cen_flat * cen_flat * icf2_flat, axis=0))
        icf2_mat = jnp.zeros((Dp, Cp), jnp.float32).at[:D, :C_out].set(icf2_flat)

        res_flat, g_flat = pl.pallas_call(
            _fgn_kernel_ord2,
            out_shape=out_shapes,
            grid_spec=pltpu.PrefetchScalarGridSpec(
                num_scalar_prefetch=0,
                grid=grid,
                in_specs=[pl.BlockSpec((tm_eff, Dp), lambda i: (i, 0)),
                          pl.BlockSpec((Dp, 2 * Cp), lambda i: (0, 0)),
                          pl.BlockSpec((Dp, Cp), lambda i: (0, 0))],
                out_specs=out_specs),
            compiler_params=cparams,
        )(x_aug, a_mat, icf2_mat)
    else:
        w_aug = (jnp.zeros((Dp, Cp), jnp.float32)
                 .at[:D, :C_out].set(w_flat)
                 .at[D, :C_out].set(bias.astype(jnp.float32)))
        cen_p = jnp.zeros((Dp, Cp), jnp.float32).at[:D, :C_out].set(cen_flat)
        icf_gen = jnp.power(icf_cl * icf_cl, 1.0 / ordinal)   # hoisted EUP work
        icf_p = jnp.zeros((Dp, Cp), jnp.float32).at[:D, :C_out].set(
            jnp.tile(icf_gen.T, (C_in, 1)))

        kernel = functools.partial(_fgn_kernel_general, ordinal=ordinal,
                                   d_chunk=min(Dp, 128))
        res_flat, g_flat = pl.pallas_call(
            kernel,
            out_shape=out_shapes,
            grid_spec=pltpu.PrefetchScalarGridSpec(
                num_scalar_prefetch=0,
                grid=grid,
                in_specs=[pl.BlockSpec((tm_eff, Dp), lambda i: (i, 0)),
                          pl.BlockSpec((Dp, Cp), lambda i: (0, 0)),
                          pl.BlockSpec((Dp, Cp), lambda i: (0, 0)),
                          pl.BlockSpec((Dp, Cp), lambda i: (0, 0))],
                out_specs=out_specs),
            compiler_params=cparams,
        )(x_aug, w_aug, cen_p, icf_p)

    res = res_flat[:M, :C_out].reshape(B, L_out, C_out).transpose(0, 2, 1)
    g = g_flat[:M, :C_out].reshape(B, L_out, C_out).transpose(0, 2, 1)
    return res, g


def _reference(x, weight, bias, centers, inv_covars, *,
               stride, dilation, padding, ordinal):
    """Pure-JAX reference mirroring the PyTorch forward (diag covar)."""
    B, C_in, L = x.shape
    C_out, _, K = weight.shape
    L_out = (L + 2 * padding - dilation * (K - 1) - 1) // stride + 1
    c = jax.lax.conv_general_dilated(
        x, weight, window_strides=(stride,), padding=[(padding, padding)],
        rhs_dilation=(dilation,), dimension_numbers=('NCH', 'OIH', 'NCH'))
    c = c + bias[None, :, None]
    xp = jnp.pad(x, ((0, 0), (0, 0), (padding, padding)))
    idx = (jnp.arange(L_out) * stride)[:, None] + (jnp.arange(K) * dilation)[None, :]
    patches = xp[:, :, idx]                                    # (B, C_in, L_out, K)
    dists = patches[:, :, None, :, :] - centers[None, :, :, None, :]
    icf = jnp.minimum(inv_covars, 1.0 / EPS) ** 2              # (C_out, K)
    s = jnp.abs(dists) * (icf ** (1.0 / ordinal))[None, None, :, None, :]
    if ordinal < 1.0:
        s = s + 1e-32
    g = jnp.exp(-jnp.sum(s ** ordinal, axis=(1, 4)))           # (B, C_out, L_out)
    return c * g, g


if __name__ == "__main__":
    # Small shapes consistent with the module's forward (NCL input).
    B, C_in, C_out, K, L = 2, 4, 8, 3, 16
    stride, dilation, padding, ordinal = 1, 1, 1, 2.0

    key = jax.random.PRNGKey(0)
    k1, k2, k3, k4, k5 = jax.random.split(key, 5)

    # Deterministic parameter init (matching shapes / init distributions of __init__).
    fan_in = C_in * K
    bound = 1.0 / math.sqrt(fan_in)
    weight = jax.random.uniform(k1, (C_out, C_in, K), jnp.float32, -bound, bound)
    bias = jax.random.uniform(k2, (C_out,), jnp.float32, -bound, bound)
    centers = 0.1 * jax.random.normal(k3, (C_in, C_out, K), jnp.float32)
    inv_covars = jax.random.uniform(k4, (C_out, K), jnp.float32,
                                    3.0 / (K + 0.5), 3.0 / (K - 0.5))
    x = jax.random.normal(k5, (B, C_in, L), jnp.float32)

    res, g = fgn_conv1d_forward(x, weight, bias, centers, inv_covars,
                                stride=stride, dilation=dilation,
                                padding=padding, ordinal=ordinal)
    jax.block_until_ready((res, g))

    res_ref, g_ref = _reference(x, weight, bias, centers, inv_covars,
                                stride=stride, dilation=dilation,
                                padding=padding, ordinal=ordinal)
    L_out = (L + 2 * padding - dilation * (K - 1) - 1) // stride + 1
    assert res.shape == (B, C_out, L_out) and g.shape == (B, C_out, L_out)
    assert jnp.allclose(res, res_ref, atol=1e-5, rtol=1e-5), \
        float(jnp.max(jnp.abs(res - res_ref)))
    assert jnp.allclose(g, g_ref, atol=1e-5, rtol=1e-5), \
        float(jnp.max(jnp.abs(g - g_ref)))
    print("KERNEL_OK")
</pallas_src>

<mosaic_0001>
module attributes {stable_mosaic.version = 11 : i64} {
  func.func @_fgn_kernel_ord2(%arg0: i32, %arg1: memref<32x128xf32, #tpu.memory_space<vmem>>, %arg2: memref<128x256xf32, #tpu.memory_space<vmem>>, %arg3: memref<128x128xf32, #tpu.memory_space<vmem>>, %arg4: memref<32x128xf32, #tpu.memory_space<vmem>>, %arg5: memref<32x128xf32, #tpu.memory_space<vmem>>) attributes {dimension_semantics = [#tpu.dimension_semantics<parallel>], iteration_bounds = array<i64: 1>, scalar_prefetch = 0 : i64, scratch_operands = 0 : i64, tpu.core_type = #tpu.core_type<tc>, window_params = [{transform_indices = @transform_0, window_bounds = array<i64: 32, 128>}, {pipeline_mode = #tpu.pipeline_mode<synchronous>, transform_indices = @transform_1, window_bounds = array<i64: 128, 256>}, {pipeline_mode = #tpu.pipeline_mode<synchronous>, transform_indices = @transform_2, window_bounds = array<i64: 128, 128>}, {transform_indices = @transform_3, window_bounds = array<i64: 32, 128>}, {transform_indices = @transform_4, window_bounds = array<i64: 32, 128>}]} {
    %c0 = arith.constant 0 : index
    %c0_0 = arith.constant 0 : index
    %0 = vector.load %arg1[%c0, %c0_0] : memref<32x128xf32, #tpu.memory_space<vmem>>, vector<32x128xf32>
    %c0_1 = arith.constant 0 : index
    %c0_2 = arith.constant 0 : index
    %1 = vector.load %arg2[%c0_1, %c0_2] : memref<128x256xf32, #tpu.memory_space<vmem>>, vector<128x256xf32>
    %cst = arith.constant dense<0.000000e+00> : vector<32x256xf32>
    %2 = tpu.matmul %0, %1, %cst {dimension_numbers = #tpu.dot_dimension_numbers<[1], [0], [0], [1], [0, 0, 1, 1], [], []>} : vector<32x128xf32>, vector<128x256xf32>, vector<32x256xf32> -> vector<32x256xf32>
    %3 = vector.extract_strided_slice %2 {offsets = [0, 0], sizes = [32, 128], strides = [1, 1]} : vector<32x256xf32> to vector<32x128xf32>
    %4 = arith.mulf %0, %0 : vector<32x128xf32>
    %c0_3 = arith.constant 0 : index
    %c0_4 = arith.constant 0 : index
    %5 = vector.load %arg3[%c0_3, %c0_4] : memref<128x128xf32, #tpu.memory_space<vmem>>, vector<128x128xf32>
    %cst_5 = arith.constant dense<0.000000e+00> : vector<32x128xf32>
    %6 = tpu.matmul %4, %5, %cst_5 {dimension_numbers = #tpu.dot_dimension_numbers<[1], [0], [0], [1], [0, 0, 1, 1], [], []>} : vector<32x128xf32>, vector<128x128xf32>, vector<32x128xf32> -> vector<32x128xf32>
    %7 = vector.extract_strided_slice %2 {offsets = [0, 128], sizes = [32, 128], strides = [1, 1]} : vector<32x256xf32> to vector<32x128xf32>
    %8 = arith.addf %6, %7 : vector<32x128xf32>
    %cst_6 = arith.constant 0.000000e+00 : f32
    %9 = vector.broadcast %cst_6 : f32 to vector<32x128xf32>
    %10 = arith.maximumf %8, %9 : vector<32x128xf32>
    %cst_7 = arith.constant 0.000000e+00 : f32
    %11 = vector.broadcast %cst_7 : f32 to vector<32x128xf32>
    %12 = arith.subf %11, %10 : vector<32x128xf32>
    %13 = math.exp %12 : vector<32x128xf32>
    %c0_8 = arith.constant 0 : index
    %c0_9 = arith.constant 0 : index
    %14 = vector.load %arg5[%c0_8, %c0_9] : memref<32x128xf32, #tpu.memory_space<vmem>>, vector<32x128xf32>
    tpu.vector_store %arg5[%c0_8, %c0_9], %13 {strides = array<i32>} : memref<32x128xf32, #tpu.memory_space<vmem>>, vector<32x128xf32>,
    %15 = arith.mulf %3, %13 : vector<32x128xf32>
    %c0_10 = arith.constant 0 : index
    %c0_11 = arith.constant 0 : index
    %16 = vector.load %arg4[%c0_10, %c0_11] : memref<32x128xf32, #tpu.memory_space<vmem>>, vector<32x128xf32>
    tpu.vector_store %arg4[%c0_10, %c0_11], %15 {strides = array<i32>} : memref<32x128xf32, #tpu.memory_space<vmem>>, vector<32x128xf32>,
    return
  }
  func.func @transform_0(%arg0: i32) -> (i32, i32) {
    %c0_i32 = arith.constant 0 : i32
    %c0_i32_0 = arith.constant 0 : i32
    return %arg0, %c0_i32 : i32, i32
  }
  func.func @transform_1(%arg0: i32) -> (i32, i32) {
    %c0_i32 = arith.constant 0 : i32
    %c0_i32_0 = arith.constant 0 : i32
    %c0_i32_1 = arith.constant 0 : i32
    return %c0_i32, %c0_i32_0 : i32, i32
  }
  func.func @transform_2(%arg0: i32) -> (i32, i32) {
    %c0_i32 = arith.constant 0 : i32
    %c0_i32_0 = arith.constant 0 : i32
    %c0_i32_1 = arith.constant 0 : i32
    return %c0_i32, %c0_i32_0 : i32, i32
  }
  func.func @transform_3(%arg0: i32) -> (i32, i32) {
    %c0_i32 = arith.constant 0 : i32
    %c0_i32_0 = arith.constant 0 : i32
    return %arg0, %c0_i32 : i32, i32
  }
  func.func @transform_4(%arg0: i32) -> (i32, i32) {
    %c0_i32 = arith.constant 0 : i32
    %c0_i32_0 = arith.constant 0 : i32
    return %arg0, %c0_i32 : i32, i32
  }
}

</mosaic_0001>

<llo_original>
// kernel: tpu_custom_call.1
$region0: #{tpu_custom_call.1}
  #allocation0 [shape = 'u32[]', space=smem, size = 0x4, offset = 0x4, fixed_abs, tag = 'smem constant byte address 0x4 - core index']
  #allocation1 [shape = 'u32[144,128]{1,0:T(1,128)}', space=vmem, size = 0x12000, scoped, tag = 'internal scratch']
  %s0 = inlined_call_operand.hbm [shape: f32[32,128], index: 0, kind: input, shape index: {}]
  %s1 = inlined_call_operand.hbm [shape: f32[128,256], index: 1, kind: input, shape index: {}]
  %s2 = inlined_call_operand.hbm [shape: f32[128,128], index: 2, kind: input, shape index: {}]
  %s3 = inlined_call_operand.hbm [shape: f32[32,128], index: 3, kind: output, shape index: {0}]
  %s4 = inlined_call_operand.hbm [shape: f32[32,128], index: 4, kind: output, shape index: {1}]
  %5 = xla_tuple %s3, %s4
  %s6 = sld [smem:[#allocation0]]
  $region42: #{tpu_custom_call.1} parent=0
    _
  %s8 = ssub.s32 1, %s6
  %s9 = scalar_select 0, %s8, %s6
  $region1: #{tpu_custom_call.1} parent=0
    #allocation2 [shape = 'u8[16384]{0}', space=vmem, size = 0x4000, scoped, tag = 'input window, operand 0, single buffered']
    #allocation3 [shape = 's32[1]{0}', space=sflag, size = 0x4, scoped, tag = 'scoped memory for tpu_custom_call.1']
    #allocation4 [shape = 's32[1]{0}', space=sflag, size = 0x4, scoped, tag = 'scoped memory for tpu_custom_call.1']
    #allocation5 [shape = 'u8[131072]{0}', space=vmem, size = 0x20000, scoped, tag = 'input window, operand 1, single buffered']
    #allocation6 [shape = 's32[1]{0}', space=sflag, size = 0x4, scoped, tag = 'scoped memory for tpu_custom_call.1']
    #allocation7 [shape = 'u8[65536]{0}', space=vmem, size = 0x10000, scoped, tag = 'input window, operand 2, single buffered']
    #allocation8 [shape = 'u8[16384]{0}', space=vmem, size = 0x4000, scoped, tag = 'output window, operand 0, single buffered']
    #allocation9 [shape = 'u8[16384]{0}', space=vmem, size = 0x4000, scoped, tag = 'output window, operand 1, single buffered']
    #allocation10 [shape = 's32[1]{0}', space=sflag, size = 0x4, scoped, tag = 'scoped memory for tpu_custom_call.1']
    %10 = vsyncpa [#allocation3], 0
    %11 = vsyncpa [#allocation6], 0
    %12 = vsyncpa [#allocation4], 0
    %13 = vsyncpa [#allocation10], 0
    // Predicated region
    $region2: #{tpu_custom_call.1} parent=1 // pred_check
      _
    $region3: #{tpu_custom_call.1} parent=1 // pred_check_branch
      %15 = sbr.rel (0) target = $region5
    $region4: #{tpu_custom_call.1} parent=1 // pred_region
      %s17 = ssub.s32 512, 512
      %18 = vsyncadd [#allocation3], %s17
      %s19 = sshll.u32 [#allocation2], 4
      %s20 = int_to_ptr.vmem [resolvable:$true] %s19
      %25 = dma.hbm_to_vmem [thread:$0]  %s0, 512, %s20, [#allocation3], 128, 128, 8
    $region5: #{tpu_custom_call.1} parent=1 // pred_fallthru
      _
    // Predicated region
    $region6: #{tpu_custom_call.1} parent=1 // pred_check
      _
    $region7: #{tpu_custom_call.1} parent=1 // pred_check_branch
      %27 = sbr.rel (0) target = $region9
    $region8: #{tpu_custom_call.1} parent=1 // pred_region
      %s29 = ssub.s32 4096, 4096
      %30 = vsyncadd [#allocation6], %s29
      %s31 = sshll.u32 [#allocation5], 4
      %s32 = int_to_ptr.vmem [resolvable:$true] %s31
      %37 = dma.hbm_to_vmem [thread:$0]  %s1, 4096, %s32, [#allocation6], 256, 256, 16
    $region9: #{tpu_custom_call.1} parent=1 // pred_fallthru
      _
    // Predicated region
    $region10: #{tpu_custom_call.1} parent=1 // pred_check
      _
    $region11: #{tpu_custom_call.1} parent=1 // pred_check_branch
      %39 = sbr.rel (0) target = $region13
    $region12: #{tpu_custom_call.1} parent=1 // pred_region
      %s41 = ssub.s32 2048, 2048
      %42 = vsyncadd [#allocation6], %s41
      %s43 = sshll.u32 [#allocation7], 4
      %s44 = int_to_ptr.vmem [resolvable:$true] %s43
      %49 = dma.hbm_to_vmem [thread:$0]  %s2, 2048, %s44, [#allocation6], 128, 128, 8
    $region13: #{tpu_custom_call.1} parent=1 // pred_fallthru
      _
    // Predicated region
    $region14: #{tpu_custom_call.1} parent=1 // pred_check
      _
    $region15: #{tpu_custom_call.1} parent=1 // pred_check_branch
      %51 = sbr.rel (0) target = $region17
    $region16: #{tpu_custom_call.1} parent=1 // pred_region
      %52 = dma.done [#allocation3], 512
    $region17: #{tpu_custom_call.1} parent=1 // pred_fallthru
      _
    // Predicated region
    $region18: #{tpu_custom_call.1} parent=1 // pred_check
      _
    $region19: #{tpu_custom_call.1} parent=1 // pred_check_branch
      %54 = sbr.rel (0) target = $region21
    $region20: #{tpu_custom_call.1} parent=1 // pred_region
      %55 = dma.done [#allocation6], 4096
    $region21: #{tpu_custom_call.1} parent=1 // pred_fallthru
      _
    // Predicated region
    $region22: #{tpu_custom_call.1} parent=1 // pred_check
      _
    $region23: #{tpu_custom_call.1} parent=1 // pred_check_branch
      %57 = sbr.rel (0) target = $region25
    $region24: #{tpu_custom_call.1} parent=1 // pred_region
      %58 = dma.done [#allocation6], 2048
    $region25: #{tpu_custom_call.1} parent=1 // pred_fallthru
      _
    %v59 = vld [vmem:[#allocation2] sm:$0xff]
    %v60 = vld [vmem:[#allocation2 + $0x8] sm:$0xff]
    %v61 = vld [vmem:[#allocation2 + $0x10] sm:$0xff]
    %v62 = vld [vmem:[#allocation2 + $0x18] sm:$0xff]
    %v63 = vld [vmem:[#allocation5] sm:$0xff]
    %v64 = vld [vmem:[#allocation5 + $0x8] sm:$0xff]
    %v65 = vld [vmem:[#allocation5 + $0x10] sm:$0xff]
    %v66 = vld [vmem:[#allocation5 + $0x18] sm:$0xff]
    %v67 = vld [vmem:[#allocation5 + $0x20] sm:$0xff]
    %v68 = vld [vmem:[#allocation5 + $0x28] sm:$0xff]
    %v69 = vld [vmem:[#allocation5 + $0x30] sm:$0xff]
    %v70 = vld [vmem:[#allocation5 + $0x38] sm:$0xff]
    %v71 = vld [vmem:[#allocation5 + $0x40] sm:$0xff]
    %v72 = vld [vmem:[#allocation5 + $0x48] sm:$0xff]
    %v73 = vld [vmem:[#allocation5 + $0x50] sm:$0xff]
    %v74 = vld [vmem:[#allocation5 + $0x58] sm:$0xff]
    %v75 = vld [vmem:[#allocation5 + $0x60] sm:$0xff]
    %v76 = vld [vmem:[#allocation5 + $0x68] sm:$0xff]
    %v77 = vld [vmem:[#allocation5 + $0x70] sm:$0xff]
    %v78 = vld [vmem:[#allocation5 + $0x78] sm:$0xff]
    %v79 = vld [vmem:[#allocation5 + $0x80] sm:$0xff]
    %v80 = vld [vmem:[#allocation5 + $0x88] sm:$0xff]
    %v81 = vld [vmem:[#allocation5 + $0x90] sm:$0xff]
    %v82 = vld [vmem:[#allocation5 + $0x98] sm:$0xff]
    %v83 = vld [vmem:[#allocation5 + $0xa0] sm:$0xff]
    %v84 = vld [vmem:[#allocation5 + $0xa8] sm:$0xff]
    %v85 = vld [vmem:[#allocation5 + $0xb0] sm:$0xff]
    %v86 = vld [vmem:[#allocation5 + $0xb8] sm:$0xff]
    %v87 = vld [vmem:[#allocation5 + $0xc0] sm:$0xff]
    %v88 = vld [vmem:[#allocation5 + $0xc8] sm:$0xff]
    %v89 = vld [vmem:[#allocation5 + $0xd0] sm:$0xff]
    %v90 = vld [vmem:[#allocation5 + $0xd8] sm:$0xff]
    %v91 = vld [vmem:[#allocation5 + $0xe0] sm:$0xff]
    %v92 = vld [vmem:[#allocation5 + $0xe8] sm:$0xff]
    %v93 = vld [vmem:[#allocation5 + $0xf0] sm:$0xff]
    %v94 = vld [vmem:[#allocation5 + $0xf8] sm:$0xff]
    %95 = vmatprep.subr.mxu0 %v94
    %96 = vmatpush1.msra.mxu0 %v93
    %97 = vmatprep.subr.mxu0 %v92
    %98 = vmatpush1.msra.mxu0 %v91
    %99 = vmatprep.subr.mxu0 %v90
    %100 = vmatpush1.msra.mxu0 %v89
    %101 = vmatprep.subr.mxu0 %v88
    %102 = vmatpush1.msra.mxu0 %v87
    %103 = vmatprep.subr.mxu0 %v86
    %104 = vmatpush1.msra.mxu0 %v85
    %105 = vmatprep.subr.mxu0 %v84
    %106 = vmatpush1.msra.mxu0 %v83
    %107 = vmatprep.subr.mxu0 %v82
    %108 = vmatpush1.msra.mxu0 %v81
    %109 = vmatprep.subr.mxu0 %v80
    %110 = vmatpush1.msra.mxu0 %v79
    %111 = vmatprep.subr.mxu0 %v78
    %112 = vmatpush1.msra.mxu0 %v77
    %113 = vmatprep.subr.mxu0 %v76
    %114 = vmatpush1.msra.mxu0 %v75
    %115 = vmatprep.subr.mxu0 %v74
    %116 = vmatpush1.msra.mxu0 %v73
    %117 = vmatprep.subr.mxu0 %v72
    %118 = vmatpush1.msra.mxu0 %v71
    %119 = vmatprep.subr.mxu0 %v70
    %120 = vmatpush1.msra.mxu0 %v69
    %121 = vmatprep.subr.mxu0 %v68
    %122 = vmatpush1.msra.mxu0 %v67
    %123 = vmatprep.subr.mxu0 %v66
    %124 = vmatpush1.msra.mxu0 %v65
    %125 = vmatprep.subr.mxu0 %v64
    %126 = vmatpush1.msra.mxu0 %v63
    %127 = vmatprep.subr.mxu0 0.0
    %128 = vmatpush2.msra.mxu0 0.0
    %129 = vmatprep.subr.mxu0 0.0
    %130 = vmatpush2.msra.mxu0 0.0
    %131 = vmatprep.subr.mxu0 0.0
    %132 = vmatpush2.msra.mxu0 0.0
    %133 = vmatprep.subr.mxu0 0.0
    %134 = vmatpush2.msra.mxu0 0.0
    %135 = vmatprep.subr.mxu0 0.0
    %136 = vmatpush2.msra.mxu0 0.0
    %137 = vmatprep.subr.mxu0 0.0
    %138 = vmatpush2.msra.mxu0 0.0
    %139 = vmatprep.subr.mxu0 0.0
    %140 = vmatpush2.msra.mxu0 0.0
    %141 = vmatprep.subr.mxu0 0.0
    %142 = vmatpush2.msra.mxu0 0.0
    %143 = vmatprep.subr.mxu0 0.0
    %144 = vmatpush2.msra.mxu0 0.0
    %145 = vmatprep.subr.mxu0 0.0
    %146 = vmatpush2.msra.mxu0 0.0
    %147 = vmatprep.subr.mxu0 0.0
    %148 = vmatpush2.msra.mxu0 0.0
    %149 = vmatprep.subr.mxu0 0.0
    %150 = vmatpush2.msra.mxu0 0.0
    %151 = vmatprep.subr.mxu0 0.0
    %152 = vmatpush2.msra.mxu0 0.0
    %153 = vmatprep.subr.mxu0 0.0
    %154 = vmatpush2.msra.mxu0 0.0
    %155 = vmatprep.subr.mxu0 0.0
    %156 = vmatpush2.msra.mxu0 0.0
    %157 = vmatprep.subr.mxu0 0.0
    %158 = vmatpush2.msra.mxu0 0.0
    %159 = vmatprep.mubr.f32.mxu0 0.0
    %160 = vmatmul.mubr.f32.gmra.mxu0 %v59
    %v161 = vpop.f32.mrf.mxu0
    %v162 = vadd.f32 0.0, %v161
    %v163 = vpop.f32.mrf.mxu0
    %v164 = vadd.f32 0.0, %v163
    %165 = vmatprep.mubr.f32.mxu0 0.0
    %166 = vmatmul.mubr.f32.gmra.mxu0 %v60
    %v167 = vpop.f32.mrf.mxu0
    %v168 = vadd.f32 0.0, %v167
    %v169 = vpop.f32.mrf.mxu0
    %v170 = vadd.f32 0.0, %v169
    %171 = vmatprep.mubr.f32.mxu0 0.0
    %172 = vmatmul.mubr.f32.gmra.mxu0 %v61
    %v173 = vpop.f32.mrf.mxu0
    %v174 = vadd.f32 0.0, %v173
    %v175 = vpop.f32.mrf.mxu0
    %v176 = vadd.f32 0.0, %v175
    %177 = vmatprep.mubr.f32.mxu0 0.0
    %178 = vmatmul.mubr.f32.gmra.mxu0 %v62
    %v179 = vpop.f32.mrf.mxu0
    %v180 = vadd.f32 0.0, %v179
    %v181 = vpop.f32.mrf.mxu0
    %v182 = vadd.f32 0.0, %v181
    %183 = vdwg.mxu0
    %v184 = vmul.f32 %v59, %v59
    %v185 = vmul.f32 %v60, %v60
    %v186 = vmul.f32 %v61, %v61
    %v187 = vmul.f32 %v62, %v62
    %v188 = vld [vmem:[#allocation7] sm:$0xff]
    %v189 = vld [vmem:[#allocation7 + $0x8] sm:$0xff]
    %v190 = vld [vmem:[#allocation7 + $0x10] sm:$0xff]
    %v191 = vld [vmem:[#allocation7 + $0x18] sm:$0xff]
    %v192 = vld [vmem:[#allocation7 + $0x20] sm:$0xff]
    %v193 = vld [vmem:[#allocation7 + $0x28] sm:$0xff]
    %v194 = vld [vmem:[#allocation7 + $0x30] sm:$0xff]
    %v195 = vld [vmem:[#allocation7 + $0x38] sm:$0xff]
    %v196 = vld [vmem:[#allocation7 + $0x40] sm:$0xff]
    %v197 = vld [vmem:[#allocation7 + $0x48] sm:$0xff]
    %v198 = vld [vmem:[#allocation7 + $0x50] sm:$0xff]
    %v199 = vld [vmem:[#allocation7 + $0x58] sm:$0xff]
    %v200 = vld [vmem:[#allocation7 + $0x60] sm:$0xff]
    %v201 = vld [vmem:[#allocation7 + $0x68] sm:$0xff]
    %v202 = vld [vmem:[#allocation7 + $0x70] sm:$0xff]
    %v203 = vld [vmem:[#allocation7 + $0x78] sm:$0xff]
    %204 = vmatprep.subr.mxu0 0.0
    %205 = vmatpush1.msra.mxu0 %v203
    %206 = vmatprep.subr.mxu0 0.0
    %207 = vmatpush1.msra.mxu0 %v202
    %208 = vmatprep.subr.mxu0 0.0
    %209 = vmatpush1.msra.mxu0 %v201
    %210 = vmatprep.subr.mxu0 0.0
    %211 = vmatpush1.msra.mxu0 %v200
    %212 = vmatprep.subr.mxu0 0.0
    %213 = vmatpush1.msra.mxu0 %v199
    %214 = vmatprep.subr.mxu0 0.0
    %215 = vmatpush1.msra.mxu0 %v198
    %216 = vmatprep.subr.mxu0 0.0
    %217 = vmatpush1.msra.mxu0 %v197
    %218 = vmatprep.subr.mxu0 0.0
    %219 = vmatpush1.msra.mxu0 %v196
    %220 = vmatprep.subr.mxu0 0.0
    %221 = vmatpush1.msra.mxu0 %v195
    %222 = vmatprep.subr.mxu0 0.0
    %223 = vmatpush1.msra.mxu0 %v194
    %224 = vmatprep.subr.mxu0 0.0
    %225 = vmatpush1.msra.mxu0 %v193
    %226 = vmatprep.subr.mxu0 0.0
    %227 = vmatpush1.msra.mxu0 %v192
    %228 = vmatprep.subr.mxu0 0.0
    %229 = vmatpush1.msra.mxu0 %v191
    %230 = vmatprep.subr.mxu0 0.0
    %231 = vmatpush1.msra.mxu0 %v190
    %232 = vmatprep.subr.mxu0 0.0
    %233 = vmatpush1.msra.mxu0 %v189
    %234 = vmatprep.subr.mxu0 0.0
    %235 = vmatpush1.msra.mxu0 %v188
    %236 = vmatprep.subr.mxu0 0.0
    %237 = vmatpush2.msra.mxu0 0.0
    %238 = vmatprep.subr.mxu0 0.0
    %239 = vmatpush2.msra.mxu0 0.0
    %240 = vmatprep.subr.mxu0 0.0
    %241 = vmatpush2.msra.mxu0 0.0
    %242 = vmatprep.subr.mxu0 0.0
    %243 = vmatpush2.msra.mxu0 0.0
    %244 = vmatprep.subr.mxu0 0.0
    %245 = vmatpush2.msra.mxu0 0.0
    %246 = vmatprep.subr.mxu0 0.0
    %247 = vmatpush2.msra.mxu0 0.0
    %248 = vmatprep.subr.mxu0 0.0
    %249 = vmatpush2.msra.mxu0 0.0
    %250 = vmatprep.subr.mxu0 0.0
    %251 = vmatpush2.msra.mxu0 0.0
    %252 = vmatprep.subr.mxu0 0.0
    %253 = vmatpush2.msra.mxu0 0.0
    %254 = vmatprep.subr.mxu0 0.0
    %255 = vmatpush2.msra.mxu0 0.0
    %256 = vmatprep.subr.mxu0 0.0
    %257 = vmatpush2.msra.mxu0 0.0
    %258 = vmatprep.subr.mxu0 0.0
    %259 = vmatpush2.msra.mxu0 0.0
    %260 = vmatprep.subr.mxu0 0.0
    %261 = vmatpush2.msra.mxu0 0.0
    %262 = vmatprep.subr.mxu0 0.0
    %263 = vmatpush2.msra.mxu0 0.0
    %264 = vmatprep.subr.mxu0 0.0
    %265 = vmatpush2.msra.mxu0 0.0
    %266 = vmatprep.subr.mxu0 0.0
    %267 = vmatpush2.msra.mxu0 0.0
    %268 = vmatprep.mubr.f32.mxu0 0.0
    %269 = vmatmul.mubr.f32.gmra.mxu0 %v184
    %v270 = vpop.f32.mrf.mxu0
    %v271 = vadd.f32 %v164, %v270
    %v272 = vpop.f32.mrf.mxu0
    %273 = vmatprep.mubr.f32.mxu0 0.0
    %274 = vmatmul.mubr.f32.gmra.mxu0 %v185
    %v275 = vpop.f32.mrf.mxu0
    %v276 = vadd.f32 %v170, %v275
    %v277 = vpop.f32.mrf.mxu0
    %278 = vmatprep.mubr.f32.mxu0 0.0
    %279 = vmatmul.mubr.f32.gmra.mxu0 %v186
    %v280 = vpop.f32.mrf.mxu0
    %v281 = vadd.f32 %v176, %v280
    %v282 = vpop.f32.mrf.mxu0
    %283 = vmatprep.mubr.f32.mxu0 0.0
    %284 = vmatmul.mubr.f32.gmra.mxu0 %v187
    %v285 = vpop.f32.mrf.mxu0
    %v286 = vadd.f32 %v182, %v285
    %v287 = vpop.f32.mrf.mxu0
    %288 = vdwg.mxu0
    %v289 = vmax.f32 %v271, 0.0
    %v290 = vmax.f32 %v276, 0.0
    %v291 = vmax.f32 %v281, 0.0
    %v292 = vmax.f32 %v286, 0.0
    %v293 = vsub.f32 0.0, %v289
    %v294 = vsub.f32 0.0, %v290
    %v295 = vsub.f32 0.0, %v291
    %v296 = vsub.f32 0.0, %v292
    %v297 = vmul.f32 %v293, 1.442695
    %v298 = vpow.pop %v297
    %v299 = vmul.f32 %v294, 1.442695
    %v300 = vpow.pop %v299
    %v301 = vmul.f32 %v295, 1.442695
    %v302 = vpow.pop %v301
    %v303 = vmul.f32 %v296, 1.442695
    %v304 = vpow.pop %v303
    %305 = vst [vmem:[#allocation9] sm:$0xff] %v298
    %306 = vst [vmem:[#allocation9 + $0x8] sm:$0xff] %v300
    %307 = vst [vmem:[#allocation9 + $0x10] sm:$0xff] %v302
    %308 = vst [vmem:[#allocation9 + $0x18] sm:$0xff] %v304
    %v309 = vmul.f32 %v162, %v298
    %v310 = vmul.f32 %v168, %v300
    %v311 = vmul.f32 %v174, %v302
    %v312 = vmul.f32 %v180, %v304
    %313 = vst [vmem:[#allocation8] sm:$0xff] %v309
    %314 = vst [vmem:[#allocation8 + $0x8] sm:$0xff] %v310
    %315 = vst [vmem:[#allocation8 + $0x10] sm:$0xff] %v311
    %316 = vst [vmem:[#allocation8 + $0x18] sm:$0xff] %v312
    // Predicated region
    $region26: #{tpu_custom_call.1} parent=1 // pred_check
      _
    $region27: #{tpu_custom_call.1} parent=1 // pred_check_branch
      %318 = sbr.rel (0) target = $region29
    $region28: #{tpu_custom_call.1} parent=1 // pred_region
      %s320 = ssub.s32 512, 512
      %321 = vsyncadd [#allocation4], %s320
      %s322 = sshll.u32 [#allocation8], 4
      %s323 = int_to_ptr.vmem [resolvable:$true] %s322
      %328 = dma.vmem_to_hbm [thread:$0]  %s323, 512, %s3, [#allocation4], 128, 128, 8
    $region29: #{tpu_custom_call.1} parent=1 // pred_fallthru
      _
    // Predicated region
    $region30: #{tpu_custom_call.1} parent=1 // pred_check
      _
    $region31: #{tpu_custom_call.1} parent=1 // pred_check_branch
      %330 = sbr.rel (0) target = $region33
    $region32: #{tpu_custom_call.1} parent=1 // pred_region
      %s332 = ssub.s32 512, 512
      %333 = vsyncadd [#allocation10], %s332
      %s334 = sshll.u32 [#allocation9], 4
      %s335 = int_to_ptr.vmem [resolvable:$true] %s334
      %340 = dma.vmem_to_hbm [thread:$0]  %s335, 512, %s4, [#allocation10], 128, 128, 8
    $region33: #{tpu_custom_call.1} parent=1 // pred_fallthru
      _
    // Predicated region
    $region34: #{tpu_custom_call.1} parent=1 // pred_check
      _
    $region35: #{tpu_custom_call.1} parent=1 // pred_check_branch
      %342 = sbr.rel (0) target = $region37
    $region36: #{tpu_custom_call.1} parent=1 // pred_region
      %343 = dma.done [#allocation4], 512
    $region37: #{tpu_custom_call.1} parent=1 // pred_fallthru
      _
    // Predicated region
    $region38: #{tpu_custom_call.1} parent=1 // pred_check
      _
    $region39: #{tpu_custom_call.1} parent=1 // pred_check_branch
      %345 = sbr.rel (0) target = $region41
    $region40: #{tpu_custom_call.1} parent=1 // pred_region
      %346 = dma.done [#allocation10], 512
    $region41: #{tpu_custom_call.1} parent=1 // pred_fallthru
      _
    %347 = vsyncpa [#allocation3], 1
    %348 = vsyncpa [#allocation6], 1
    %349 = vsyncpa [#allocation4], 1
    %350 = vsyncpa [#allocation10], 1

</llo_original>
